<compile_context>
chip_gen: v7x
topology: tpu7x:2x2x1
jax: 0.10.0
libtpu: 0.0.40
codegen_flags: <defaults>
</compile_context>

<pallas_src>
import functools

import jax
import jax.numpy as jnp
from jax.experimental import pallas as pl
from jax.experimental.pallas import tpu as pltpu


def _round_up(x, m):
    return ((x + m - 1) // m) * m


def _activation(x, kind, alpha=0.25):
    if kind == "relu":
        return jnp.maximum(x, 0.0)
    elif kind == "prelu":
        return jnp.where(x > 0, x, alpha * x)
    raise ValueError(f"unsupported activation: {kind}")


def _vmem_capacity_bytes():
    """Physical VMEM of the local part (v5e/v6e: 128 MiB, v7x: 64 MiB per TC)."""
    try:
        return int(pltpu.get_tpu_info().vmem_capacity_bytes)
    except Exception:
        return 64 * 1024 * 1024          # conservative (v7x-sized) fallback


def _choose_tile_rows(n_rows, n_in, n_h, vmem_cap):
    """Row-tile size chosen by bytes, bounded by a generation-aware VMEM budget."""
    # Per-row VMEM bytes inside the kernel: streamed f32 x tiles (2 seqs,
    # double-buffered) + in-register bf16 copies + f32 h intermediates (2 seqs)
    # + double-buffered output rows (2 seqs).
    per_row = (2 * 2 * n_in * 4) + (2 * n_in * 2) + (2 * n_h * 4) + 16
    # Resident operands — Pallas double-buffers even constant-index_map specs.
    resident = 2 * (n_in * n_h * 2) + 2 * (n_h * 4)
    budget = max(int(0.45 * vmem_cap) - resident, 256 * 1024)
    cap_rows = max(8, budget // per_row)
    # HBM-streaming target: ~4 MiB of f32 x per sequence per grid step
    # (tiny tiles only reach ~30-60% of the HBM roofline).
    target_rows = max(256, (4 * 1024 * 1024) // max(n_in * 4, 1))
    tile_r = min(cap_rows, target_rows)
    if n_rows >= 16:
        # Guarantee >= 2 row tiles so v7x's "parallel" axis feeds both TCs.
        tile_r = min(tile_r, -(-n_rows // 2))
    tile_r = min(tile_r, max(n_rows, 8))
    return max(8, _round_up(tile_r, 8))


def _ggd_row_kernel(sg_ref, x1_ref, x2_ref, w_ref, b_ref, o1_ref, o2_ref, *,
                    activation, prelu_alpha):
    """One row tile of BOTH sequences: per-row sum(act(x @ W + b)) + scalar sg."""
    w = w_ref[...]                                    # (n_in, n_h) bf16, resident
    b = b_ref[...]                                    # (1, n_h)    f32, resident
    sg = sg_ref[0, 0]                                 # scalar sum(global MLP), SMEM
    for x_ref, o_ref in ((x1_ref, o1_ref), (x2_ref, o2_ref)):
        x = x_ref[...].astype(w.dtype)                # f32 HBM stream -> bf16 regs
        h = jnp.dot(x, w, preferred_element_type=jnp.float32) + b
        h = _activation(h, activation, prelu_alpha)   # (tile_r, n_h) f32
        # sum(h + g, 1) == sum(h, 1) + sum(g); sg == sum(g).
        o_ref[...] = jnp.sum(h, axis=1, keepdims=True) + sg


def ggd_forward(seq1, seq2, node_emb, params, *,
                readout="mean", activation="relu", prelu_alpha=0.25,
                compute_dtype=jnp.bfloat16):
    """Returns logits of shape (1, 2*N), matching the PyTorch GGD module."""
    N, n_in = seq1.shape
    n_h = params["w"].shape[1]

    # ---------- hoisted graph readout + global MLP (single row, plain XLA) ----------
    if readout == "mean":
        g_in = jnp.mean(node_emb, axis=0, keepdims=True)
    elif readout == "max":
        g_in = jnp.max(node_emb, axis=0, keepdims=True)
    elif readout == "sum":
        g_in = jnp.sum(node_emb, axis=0, keepdims=True)
    else:
        raise ValueError(f"Invalid readout option: {readout}")
    g = _activation(g_in.astype(jnp.float32) @ params["wg"].astype(jnp.float32)
                    + params["bg"].astype(jnp.float32), activation, prelu_alpha)
    sg = jnp.sum(g).reshape(1, 1).astype(jnp.float32)     # scalar for SMEM

    # ---------- row tiling (no concat / pad copy of the activation stream) ----------
    vmem_cap = _vmem_capacity_bytes()
    tile_r = _choose_tile_rows(N, n_in, n_h, vmem_cap)
    num_tiles = -(-N // tile_r)
    rows_pad = num_tiles * tile_r            # padded output rows get sliced off

    x1 = seq1.astype(jnp.float32)
    x2 = seq2.astype(jnp.float32)
    w = params["w"].astype(compute_dtype)    # small; single bf16 copy, resident
    b = params["b"].astype(jnp.float32).reshape(1, n_h)

    # ---------- VMEM budget (counts double-buffered resident W / b) ----------
    vmem_bytes = (2 * 2 * tile_r * n_in * 4      # streamed x, 2 seqs, 2 bufs (f32)
                  + 2 * tile_r * n_in * 2        # in-register bf16 copies
                  + 2 * n_in * n_h * 2           # W, double-buffered (bf16)
                  + 2 * n_h * 4                  # bias, double-buffered
                  + 2 * tile_r * n_h * 4         # f32 h intermediates, 2 seqs
                  + 2 * 2 * tile_r * 4)          # outputs, 2 seqs, 2 bufs
    vmem_limit = int(min(max(int(vmem_bytes * 1.5), 16 * 1024 * 1024),
                         int(0.70 * vmem_cap)))

    kernel = functools.partial(_ggd_row_kernel, activation=activation,
                               prelu_alpha=prelu_alpha)

    o1, o2 = pl.pallas_call(
        kernel,
        out_shape=(jax.ShapeDtypeStruct((rows_pad, 1), jnp.float32),
                   jax.ShapeDtypeStruct((rows_pad, 1), jnp.float32)),
        grid=(num_tiles,),
        in_specs=[
            pl.BlockSpec(memory_space=pltpu.SMEM),               # sg (1,1) f32
            pl.BlockSpec((tile_r, n_in), lambda i: (i, 0)),      # seq1 row tile (f32)
            pl.BlockSpec((tile_r, n_in), lambda i: (i, 0)),      # seq2 row tile (f32)
            pl.BlockSpec((n_in, n_h), lambda i: (0, 0)),         # W (resident, bf16)
            pl.BlockSpec((1, n_h), lambda i: (0, 0)),            # b (resident, f32)
        ],
        out_specs=(pl.BlockSpec((tile_r, 1), lambda i: (i, 0)),
                   pl.BlockSpec((tile_r, 1), lambda i: (i, 0))),
        compiler_params=pltpu.CompilerParams(
            dimension_semantics=("parallel",),
            vmem_limit_bytes=vmem_limit),
    )(sg, x1, x2, w, b)

    sc1 = o1[:N, 0]
    sc2 = o2[:N, 0]
    # rows 0..N-1 == sc_1, rows N..2N-1 == sc_2  ==  cat((sc_1, sc_2), dim=1)
    return jnp.concatenate([sc1, sc2])[None, :]


def init_params(key, n_in, n_h):
    k1, k2, k3, k4 = jax.random.split(key, 4)
    scale = 1.0 / jnp.sqrt(jnp.float32(n_in))
    return {
        "w":  jax.random.normal(k1, (n_in, n_h), jnp.float32) * scale,
        "b":  jax.random.normal(k2, (1, n_h), jnp.float32) * scale,
        "wg": jax.random.normal(k3, (n_in, n_h), jnp.float32) * scale,
        "bg": jax.random.normal(k4, (1, n_h), jnp.float32) * scale,
    }


def _reference(seq1, seq2, node_emb, params, readout="mean", activation="relu",
               prelu_alpha=0.25, compute_dtype=jnp.bfloat16):
    """Pure-JAX reference applying the same bf16 quantization of x / W."""
    act = lambda v: _activation(v, activation, prelu_alpha)
    w = params["w"].astype(compute_dtype).astype(jnp.float32)
    b = params["b"].astype(jnp.float32)
    x1 = seq1.astype(compute_dtype).astype(jnp.float32)
    x2 = seq2.astype(compute_dtype).astype(jnp.float32)
    h_pos = act(x1 @ w + b)
    h_neg = act(x2 @ w + b)
    if readout == "mean":
        g_in = jnp.mean(node_emb, axis=0, keepdims=True)
    elif readout == "max":
        g_in = jnp.max(node_emb, axis=0, keepdims=True)
    else:
        g_in = jnp.sum(node_emb, axis=0, keepdims=True)
    g = act(g_in @ params["wg"] + params["bg"])
    sc_1 = (h_pos + g).sum(1)[None, :]
    sc_2 = (h_neg + g).sum(1)[None, :]
    return jnp.concatenate([sc_1, sc_2], axis=1)


if __name__ == "__main__":
    key = jax.random.PRNGKey(0)
    k_s1, k_s2, k_node, k_p = jax.random.split(key, 4)

    # Small synthetic shapes; N=16 gives a 2-tile "parallel" grid.
    N, M, n_in, n_h = 16, 12, 32, 16

    seq1 = jax.random.normal(k_s1, (N, n_in), jnp.float32)
    seq2 = jax.random.normal(k_s2, (N, n_in), jnp.float32)
    node_emb = jax.random.normal(k_node, (M, n_in), jnp.float32)
    params = init_params(k_p, n_in, n_h)

    fwd = jax.jit(functools.partial(ggd_forward, readout="mean",
                                    activation="relu"))
    logits = fwd(seq1, seq2, node_emb, params)
    jax.block_until_ready(logits)

    ref = _reference(seq1, seq2, node_emb, params,
                     readout="mean", activation="relu")
    assert logits.shape == (1, 2 * N), logits.shape
    assert jnp.allclose(logits, ref, atol=1e-2, rtol=1e-3), (logits, ref)

    print("KERNEL_OK")
</pallas_src>

<mosaic_0001>
module attributes {stable_mosaic.version = 11 : i64} {
  func.func @_ggd_row_kernel(%arg0: i32, %arg1: memref<1x1xf32, #tpu.memory_space<smem>>, %arg2: memref<8x32xf32, #tpu.memory_space<vmem>>, %arg3: memref<8x32xf32, #tpu.memory_space<vmem>>, %arg4: memref<32x16xbf16, #tpu.memory_space<vmem>>, %arg5: memref<1x16xf32, #tpu.memory_space<vmem>>, %arg6: memref<8x1xf32, #tpu.memory_space<vmem>>, %arg7: memref<8x1xf32, #tpu.memory_space<vmem>>) attributes {dimension_semantics = [#tpu.dimension_semantics<parallel>], iteration_bounds = array<i64: 2>, scalar_prefetch = 0 : i64, scratch_operands = 0 : i64, tpu.core_type = #tpu.core_type<tc>, window_params = [{transform_indices = @transform_0, window_bounds = array<i64: 1, 1>}, {transform_indices = @transform_1, window_bounds = array<i64: 8, 32>}, {transform_indices = @transform_2, window_bounds = array<i64: 8, 32>}, {pipeline_mode = #tpu.pipeline_mode<synchronous>, transform_indices = @transform_3, window_bounds = array<i64: 32, 16>}, {pipeline_mode = #tpu.pipeline_mode<synchronous>, transform_indices = @transform_4, window_bounds = array<i64: 1, 16>}, {transform_indices = @transform_5, window_bounds = array<i64: 8, 1>}, {transform_indices = @transform_6, window_bounds = array<i64: 8, 1>}]} {
    %c0 = arith.constant 0 : index
    %c0_0 = arith.constant 0 : index
    %0 = vector.load %arg4[%c0, %c0_0] : memref<32x16xbf16, #tpu.memory_space<vmem>>, vector<32x16xbf16>
    %c0_1 = arith.constant 0 : index
    %c0_2 = arith.constant 0 : index
    %1 = vector.load %arg5[%c0_1, %c0_2] : memref<1x16xf32, #tpu.memory_space<vmem>>, vector<1x16xf32>
    %c0_3 = arith.constant 0 : index
    %c0_4 = arith.constant 0 : index
    %2 = memref.load %arg1[%c0_3, %c0_4] : memref<1x1xf32, #tpu.memory_space<smem>>
    %c0_5 = arith.constant 0 : index
    %c0_6 = arith.constant 0 : index
    %3 = vector.load %arg2[%c0_5, %c0_6] : memref<8x32xf32, #tpu.memory_space<vmem>>, vector<8x32xf32>
    %4 = arith.truncf %3 : vector<8x32xf32> to vector<8x32xbf16>
    %cst = arith.constant dense<0.000000e+00> : vector<8x16xf32>
    %5 = tpu.matmul %4, %0, %cst {dimension_numbers = #tpu.dot_dimension_numbers<[1], [0], [0], [1], [0, 0, 1, 1], [], []>} : vector<8x32xbf16>, vector<32x16xbf16>, vector<8x16xf32> -> vector<8x16xf32>
    %6 = vector.broadcast %1 : vector<1x16xf32> to vector<8x16xf32>
    %7 = arith.addf %5, %6 : vector<8x16xf32>
    %cst_7 = arith.constant 0.000000e+00 : f32
    %8 = vector.broadcast %cst_7 : f32 to vector<8x16xf32>
    %9 = arith.maximumf %7, %8 : vector<8x16xf32>
    %cst_8 = arith.constant dense<0.000000e+00> : vector<8xf32>
    %10 = vector.multi_reduction <add>, %9, %cst_8 [1] : vector<8x16xf32> to vector<8xf32>
    %11 = vector.shape_cast %10 : vector<8xf32> to vector<8x1xf32>
    %12 = vector.broadcast %2 : f32 to vector<8x1xf32>
    %13 = arith.addf %11, %12 : vector<8x1xf32>
    %c0_9 = arith.constant 0 : index
    %c0_10 = arith.constant 0 : index
    %14 = vector.load %arg6[%c0_9, %c0_10] : memref<8x1xf32, #tpu.memory_space<vmem>>, vector<8x1xf32>
    tpu.vector_store %arg6[%c0_9, %c0_10], %13 {strides = array<i32>} : memref<8x1xf32, #tpu.memory_space<vmem>>, vector<8x1xf32>,
    %c0_11 = arith.constant 0 : index
    %c0_12 = arith.constant 0 : index
    %15 = vector.load %arg3[%c0_11, %c0_12] : memref<8x32xf32, #tpu.memory_space<vmem>>, vector<8x32xf32>
    %16 = arith.truncf %15 : vector<8x32xf32> to vector<8x32xbf16>
    %cst_13 = arith.constant dense<0.000000e+00> : vector<8x16xf32>
    %17 = tpu.matmul %16, %0, %cst_13 {dimension_numbers = #tpu.dot_dimension_numbers<[1], [0], [0], [1], [0, 0, 1, 1], [], []>} : vector<8x32xbf16>, vector<32x16xbf16>, vector<8x16xf32> -> vector<8x16xf32>
    %18 = vector.broadcast %1 : vector<1x16xf32> to vector<8x16xf32>
    %19 = arith.addf %17, %18 : vector<8x16xf32>
    %cst_14 = arith.constant 0.000000e+00 : f32
    %20 = vector.broadcast %cst_14 : f32 to vector<8x16xf32>
    %21 = arith.maximumf %19, %20 : vector<8x16xf32>
    %cst_15 = arith.constant dense<0.000000e+00> : vector<8xf32>
    %22 = vector.multi_reduction <add>, %21, %cst_15 [1] : vector<8x16xf32> to vector<8xf32>
    %23 = vector.shape_cast %22 : vector<8xf32> to vector<8x1xf32>
    %24 = vector.broadcast %2 : f32 to vector<8x1xf32>
    %25 = arith.addf %23, %24 : vector<8x1xf32>
    %c0_16 = arith.constant 0 : index
    %c0_17 = arith.constant 0 : index
    %26 = vector.load %arg7[%c0_16, %c0_17] : memref<8x1xf32, #tpu.memory_space<vmem>>, vector<8x1xf32>
    tpu.vector_store %arg7[%c0_16, %c0_17], %25 {strides = array<i32>} : memref<8x1xf32, #tpu.memory_space<vmem>>, vector<8x1xf32>,
    return
  }
  func.func @transform_0(%arg0: i32) -> (i32, i32) {
    %c0_i32 = arith.constant 0 : i32
    %c0_i32_0 = arith.constant 0 : i32
    %c0_i32_1 = arith.constant 0 : i32
    return %c0_i32, %c0_i32_0 : i32, i32
  }
  func.func @transform_1(%arg0: i32) -> (i32, i32) {
    %c0_i32 = arith.constant 0 : i32
    %c0_i32_0 = arith.constant 0 : i32
    return %arg0, %c0_i32 : i32, i32
  }
  func.func @transform_2(%arg0: i32) -> (i32, i32) {
    %c0_i32 = arith.constant 0 : i32
    %c0_i32_0 = arith.constant 0 : i32
    return %arg0, %c0_i32 : i32, i32
  }
  func.func @transform_3(%arg0: i32) -> (i32, i32) {
    %c0_i32 = arith.constant 0 : i32
    %c0_i32_0 = arith.constant 0 : i32
    %c0_i32_1 = arith.constant 0 : i32
    return %c0_i32, %c0_i32_0 : i32, i32
  }
  func.func @transform_4(%arg0: i32) -> (i32, i32) {
    %c0_i32 = arith.constant 0 : i32
    %c0_i32_0 = arith.constant 0 : i32
    %c0_i32_1 = arith.constant 0 : i32
    return %c0_i32, %c0_i32_0 : i32, i32
  }
  func.func @transform_5(%arg0: i32) -> (i32, i32) {
    %c0_i32 = arith.constant 0 : i32
    %c0_i32_0 = arith.constant 0 : i32
    return %arg0, %c0_i32 : i32, i32
  }
  func.func @transform_6(%arg0: i32) -> (i32, i32) {
    %c0_i32 = arith.constant 0 : i32
    %c0_i32_0 = arith.constant 0 : i32
    return %arg0, %c0_i32 : i32, i32
  }
}

</mosaic_0001>

<llo_original>
// kernel: ggd_forward.1
$region0: #{ggd_forward.1}
  #allocation0 [shape = 'u32[]', space=smem, size = 0x4, offset = 0x4, fixed_abs, tag = 'smem constant byte address 0x4 - core index']
  #allocation1 [shape = 'u32[144,128]{1,0:T(1,128)}', space=vmem, size = 0x12000, scoped, tag = 'internal scratch']
  #allocation2 [shape = 'f32[1,1]{1,0:T(1,128)S(6)}', space=smem, size = 0x200, scoped, tag = 'scoped memory for ggd_forward.1']
  %s0 = inlined_call_operand.<no memory space> [shape: f32[1,1], index: 0, kind: input, shape index: {}]
  %s1 = inlined_call_operand.vmem [shape: f32[16,32], index: 1, kind: input, shape index: {}]
  %s2 = inlined_call_operand.vmem [shape: f32[16,32], index: 2, kind: input, shape index: {}]
  %s3 = inlined_call_operand.vmem [shape: bf16[32,16], index: 3, kind: input, shape index: {}]
  %s4 = inlined_call_operand.vmem [shape: f32[1,16], index: 4, kind: input, shape index: {}]
  %s5 = inlined_call_operand.vmem [shape: f32[16,1], index: 5, kind: output, shape index: {0}]
  %s6 = inlined_call_operand.vmem [shape: f32[16,1], index: 6, kind: output, shape index: {1}]
  %7 = xla_tuple %s5, %s6
  %s8 = sld [smem:[#allocation0]]
  $region61: #{ggd_forward.1} parent=0
    _
  %s10 = ssub.s32 1, %s8
  %s11 = scalar_select 0, %s10, %s8
  %12 = sst [smem:[#allocation2]] %s0
  loop: start=0, step=1, limit=4
  $region2: #{ggd_forward.1} parent=0 // loop_pre_header
    _
  $region3: #{ggd_forward.1} parent=0 // loop_header
    %s14 = sphi 0, %s18
    %p15 = scmp.ge.s32.totalorder %s14, 4
    %s22 = sphi 0, %s22
    %s24 = sphi 0, %s22
    %s25 = sphi 0, %s24
    %s39 = sphi 0, %s25
    %s45 = sphi 0, %s47
    %s48 = sphi 0, %s45
    %s49 = sphi 0, %s48
    %s65 = sphi 0, %s49
    %s71 = sphi 0, %s73
    %s74 = sphi 0, %s71
    %s75 = sphi 0, %s74
    %s91 = sphi 0, %s75
    %s95 = sphi 0, %s95
    %s97 = sphi 0, %s95
    %s98 = sphi 0, %s97
    %s112 = sphi 0, %s98
    %s116 = sphi 0, %s116
    %s118 = sphi 0, %s116
    %s119 = sphi 0, %s118
    %s133 = sphi 0, %s119
    %s139 = sphi 0, %s141
    %s142 = sphi 0, %s139
    %s143 = sphi 0, %s142
    %s159 = sphi 0, %s143
    %s165 = sphi 0, %s167
    %s168 = sphi 0, %s165
    %s169 = sphi 0, %s168
    %s185 = sphi 0, %s169
  $region4: #{ggd_forward.1} parent=0 // loop_header_branch
    %17 = sbr.rel (%p15) target = $region8
  $region5: #{ggd_forward.1} parent=0 // loop_body
    %s19 = ssub.s32 %s14, 1
    %s20 = ssub.s32 %s14, 2
    %s21 = sadd.s32 %s14, 1
    %s23 = sadd.s32 %s22, 1
    %p26 = scmp.eq.s32.totalorder %s14, 1
    %p27 = scmp.ne.s32.totalorder %s22, %s24
    %p28 = scmp.eq.s32.totalorder %s14, 0
    %p29 = por %p27, %p28
    %p30 = scmp.ne.s32.totalorder %s22, %s24
    %p31 = scmp.eq.s32.totalorder %s19, 1
    %p32 = por %p30, %p31
    %p33 = scmp.ne.s32.totalorder %s24, %s25
    %p34 = scmp.eq.s32.totalorder %s19, 0
    %p35 = por %p33, %p34
    %p36 = scmp.ne.s32.totalorder %s24, %s25
    %p37 = scmp.eq.s32.totalorder %s20, 1
    %p38 = por %p36, %p37
    %p40 = scmp.ne.s32.totalorder %s25, %s39
    %p41 = scmp.eq.s32.totalorder %s20, 0
    %p42 = por %p40, %p41
    %s43 = ssub.s32 %s14, %s21
    %p44 = scmp.eq.s32.totalorder %s43, 0
    %s46 = sadd.s32 %s45, 1
    %s47 = scalar_select %p44, %s45, %s46
    %p50 = pneg %p44
    %p51 = scmp.eq.s32.totalorder %s14, 1
    %p52 = por %p50, %p51
    %p53 = scmp.ne.s32.totalorder %s45, %s48
    %p54 = scmp.eq.s32.totalorder %s14, 0
    %p55 = por %p53, %p54
    %p56 = scmp.ne.s32.totalorder %s45, %s48
    %p57 = scmp.eq.s32.totalorder %s19, 1
    %p58 = por %p56, %p57
    %p59 = scmp.ne.s32.totalorder %s48, %s49
    %p60 = scmp.eq.s32.totalorder %s19, 0
    %p61 = por %p59, %p60
    %p62 = scmp.ne.s32.totalorder %s48, %s49
    %p63 = scmp.eq.s32.totalorder %s20, 1
    %p64 = por %p62, %p63
    %p66 = scmp.ne.s32.totalorder %s49, %s65
    %p67 = scmp.eq.s32.totalorder %s20, 0
    %p68 = por %p66, %p67
    %s69 = ssub.s32 %s14, %s21
    %p70 = scmp.eq.s32.totalorder %s69, 0
    %s72 = sadd.s32 %s71, 1
    %s73 = scalar_select %p70, %s71, %s72
    %p76 = pneg %p70
    %p77 = scmp.eq.s32.totalorder %s14, 1
    %p78 = por %p76, %p77
    %p79 = scmp.ne.s32.totalorder %s71, %s74
    %p80 = scmp.eq.s32.totalorder %s14, 0
    %p81 = por %p79, %p80
    %p82 = scmp.ne.s32.totalorder %s71, %s74
    %p83 = scmp.eq.s32.totalorder %s19, 1
    %p84 = por %p82, %p83
    %p85 = scmp.ne.s32.totalorder %s74, %s75
    %p86 = scmp.eq.s32.totalorder %s19, 0
    %p87 = por %p85, %p86
    %p88 = scmp.ne.s32.totalorder %s74, %s75
    %p89 = scmp.eq.s32.totalorder %s20, 1
    %p90 = por %p88, %p89
    %p92 = scmp.ne.s32.totalorder %s75, %s91
    %p93 = scmp.eq.s32.totalorder %s20, 0
    %p94 = por %p92, %p93
    %s96 = sadd.s32 %s95, 1
    %p99 = scmp.eq.s32.totalorder %s14, 1
    %p100 = scmp.ne.s32.totalorder %s95, %s97
    %p101 = scmp.eq.s32.totalorder %s14, 0
    %p102 = por %p100, %p101
    %p103 = scmp.ne.s32.totalorder %s95, %s97
    %p104 = scmp.eq.s32.totalorder %s19, 1
    %p105 = por %p103, %p104
    %p106 = scmp.ne.s32.totalorder %s97, %s98
    %p107 = scmp.eq.s32.totalorder %s19, 0
    %p108 = por %p106, %p107
    %p109 = scmp.ne.s32.totalorder %s97, %s98
    %p110 = scmp.eq.s32.totalorder %s20, 1
    %p111 = por %p109, %p110
    %p113 = scmp.ne.s32.totalorder %s98, %s112
    %p114 = scmp.eq.s32.totalorder %s20, 0
    %p115 = por %p113, %p114
    %s117 = sadd.s32 %s116, 1
    %p120 = scmp.eq.s32.totalorder %s14, 1
    %p121 = scmp.ne.s32.totalorder %s116, %s118
    %p122 = scmp.eq.s32.totalorder %s14, 0
    %p123 = por %p121, %p122
    %p124 = scmp.ne.s32.totalorder %s116, %s118
    %p125 = scmp.eq.s32.totalorder %s19, 1
    %p126 = por %p124, %p125
    %p127 = scmp.ne.s32.totalorder %s118, %s119
    %p128 = scmp.eq.s32.totalorder %s19, 0
    %p129 = por %p127, %p128
    %p130 = scmp.ne.s32.totalorder %s118, %s119
    %p131 = scmp.eq.s32.totalorder %s20, 1
    %p132 = por %p130, %p131
    %p134 = scmp.ne.s32.totalorder %s119, %s133
    %p135 = scmp.eq.s32.totalorder %s20, 0
    %p136 = por %p134, %p135
    %s137 = ssub.s32 %s14, %s21
    %p138 = scmp.eq.s32.totalorder %s137, 0
    %s140 = sadd.s32 %s139, 1
    %s141 = scalar_select %p138, %s139, %s140
    %p144 = pneg %p138
    %p145 = scmp.eq.s32.totalorder %s14, 1
    %p146 = por %p144, %p145
    %p147 = scmp.ne.s32.totalorder %s139, %s142
    %p148 = scmp.eq.s32.totalorder %s14, 0
    %p149 = por %p147, %p148
    %p150 = scmp.ne.s32.totalorder %s139, %s142
    %p151 = scmp.eq.s32.totalorder %s19, 1
    %p152 = por %p150, %p151
    %p153 = scmp.ne.s32.totalorder %s142, %s143
    %p154 = scmp.eq.s32.totalorder %s19, 0
    %p155 = por %p153, %p154
    %p156 = scmp.ne.s32.totalorder %s142, %s143
    %p157 = scmp.eq.s32.totalorder %s20, 1
    %p158 = por %p156, %p157
    %p160 = scmp.ne.s32.totalorder %s143, %s159
    %p161 = scmp.eq.s32.totalorder %s20, 0
    %p162 = por %p160, %p161
    %s163 = ssub.s32 %s14, %s21
    %p164 = scmp.eq.s32.totalorder %s163, 0
    %s166 = sadd.s32 %s165, 1
    %s167 = scalar_select %p164, %s165, %s166
    %p170 = pneg %p164
    %p171 = scmp.eq.s32.totalorder %s14, 1
    %p172 = por %p170, %p171
    %p173 = scmp.ne.s32.totalorder %s165, %s168
    %p174 = scmp.eq.s32.totalorder %s14, 0
    %p175 = por %p173, %p174
    %p176 = scmp.ne.s32.totalorder %s165, %s168
    %p177 = scmp.eq.s32.totalorder %s19, 1
    %p178 = por %p176, %p177
    %p179 = scmp.ne.s32.totalorder %s168, %s169
    %p180 = scmp.eq.s32.totalorder %s19, 0
    %p181 = por %p179, %p180
    %p182 = scmp.ne.s32.totalorder %s168, %s169
    %p183 = scmp.eq.s32.totalorder %s20, 1
    %p184 = por %p182, %p183
    %p186 = scmp.ne.s32.totalorder %s169, %s185
    %p187 = scmp.eq.s32.totalorder %s20, 0
    %p188 = por %p186, %p187
    %p189 = scmp.le.s32.totalorder 1, %s14
    %p190 = scmp.lt.s32.totalorder %s14, 3
    %p191 = pnand %p189, %p190
    %p192 = pneg %p191
    // Predicated region
    $region9: #{ggd_forward.1} parent=5 // pred_check
      _
    $region10: #{ggd_forward.1} parent=5 // pred_check_branch
      %194 = sbr.rel (%p191) target = $region12
    $region11: #{ggd_forward.1} parent=5 // pred_region
      %s195 = ssub.s32 %s14, 1
      // Predicated region
      $region13: #{ggd_forward.1} parent=11 // pred_check
        %p196 = pneg %p35
      $region14: #{ggd_forward.1} parent=11 // pred_check_branch
        %198 = sbr.rel (%p196) target = $region16
      $region15: #{ggd_forward.1} parent=11 // pred_region
        _
      $region16: #{ggd_forward.1} parent=11 // pred_fallthru
        _
      // Predicated region
      $region17: #{ggd_forward.1} parent=11 // pred_check
        %p199 = pneg %p108
      $region18: #{ggd_forward.1} parent=11 // pred_check_branch
        %201 = sbr.rel (%p199) target = $region20
      $region19: #{ggd_forward.1} parent=11 // pred_region
        _
      $region20: #{ggd_forward.1} parent=11 // pred_fallthru
        _
      // Predicated region
      $region21: #{ggd_forward.1} parent=11 // pred_check
        %p202 = pneg %p129
      $region22: #{ggd_forward.1} parent=11 // pred_check_branch
        %204 = sbr.rel (%p202) target = $region24
      $region23: #{ggd_forward.1} parent=11 // pred_region
        _
      $region24: #{ggd_forward.1} parent=11 // pred_fallthru
        _
    $region12: #{ggd_forward.1} parent=5 // pred_fallthru
      _
    %p205 = scmp.lt.s32.totalorder %s14, 2
    // Predicated region
    $region25: #{ggd_forward.1} parent=5 // pred_check
      %p206 = pneg %p205
    $region26: #{ggd_forward.1} parent=5 // pred_check_branch
      %208 = sbr.rel (%p206) target = $region28
    $region27: #{ggd_forward.1} parent=5 // pred_region
      // Predicated region
      $region29: #{ggd_forward.1} parent=27 // pred_check
        %p209 = pneg %p55
      $region30: #{ggd_forward.1} parent=27 // pred_check_branch
        %211 = sbr.rel (%p209) target = $region32
      $region31: #{ggd_forward.1} parent=27 // pred_region
        %p212 = scmp.lt.s32.totalorder %s14, 1
        %s213 = scalar_select %p212, %s14, 1
        %s214 = smul.addr %s213, 8
        %s215 = scalar_lea.vmem %s1, %s214
      $region32: #{ggd_forward.1} parent=27 // pred_fallthru
        _
      // Predicated region
      $region33: #{ggd_forward.1} parent=27 // pred_check
        %p216 = pneg %p81
      $region34: #{ggd_forward.1} parent=27 // pred_check_branch
        %218 = sbr.rel (%p216) target = $region36
      $region35: #{ggd_forward.1} parent=27 // pred_region
        %p219 = scmp.lt.s32.totalorder %s14, 1
        %s220 = scalar_select %p219, %s14, 1
        %s221 = smul.addr %s220, 8
        %s222 = scalar_lea.vmem %s2, %s221
      $region36: #{ggd_forward.1} parent=27 // pred_fallthru
        _
    $region28: #{ggd_forward.1} parent=5 // pred_fallthru
      _
    %p223 = scmp.le.s32.totalorder 1, %s14
    %p224 = scmp.lt.s32.totalorder %s14, 3
    %p225 = pnand %p223, %p224
    %p226 = pneg %p225
    // Predicated region
    $region37: #{ggd_forward.1} parent=5 // pred_check
      _
    $region38: #{ggd_forward.1} parent=5 // pred_check_branch
      %228 = sbr.rel (%p225) target = $region40
    $region39: #{ggd_forward.1} parent=5 // pred_region
      %s229 = ssub.s32 %s14, 1
      %p230 = pneg %p35
      %p231 = pneg %p32
      %p232 = scmp.lt.s32.totalorder %s19, 1
      %s233 = scalar_select %p232, %s19, 1
      %s234 = smul.addr %s233, 8
      %s235 = scalar_lea.vmem %s1, %s234
      %p236 = pneg %p61
      %p237 = pneg %p58
      %p238 = scmp.lt.s32.totalorder %s19, 1
      %s239 = scalar_select %p238, %s19, 1
      %s240 = smul.addr %s239, 8
      %s241 = scalar_lea.vmem %s2, %s240
      %p242 = pneg %p87
      %p243 = pneg %p84
      %p244 = pneg %p108
      %p245 = pneg %p105
      %p246 = pneg %p129
      %p247 = pneg %p126
      %p248 = pneg %p155
      %p249 = pneg %p152
      %p250 = scmp.lt.s32.totalorder %s19, 1
      %s251 = scalar_select %p250, %s19, 1
      %s252 = smul.addr %s251, 8
      %s253 = scalar_lea.vmem %s5, %s252
      %p254 = pneg %p181
      %p255 = pneg %p178
      %p256 = scmp.lt.s32.totalorder %s19, 1
      %s257 = scalar_select %p256, %s19, 1
      %s258 = smul.addr %s257, 8
      %s259 = scalar_lea.vmem %s6, %s258
      %p260 = scmp.lt.s32.totalorder %s19, 1
      %s261 = scalar_select %p260, %s19, 1
      %s262 = smul.addr %s261, 8
      %s263 = scalar_lea.vmem %s1, %s262
      %p264 = scmp.lt.s32.totalorder %s19, 1
      %s265 = scalar_select %p264, %s19, 1
      %s266 = smul.addr %s265, 8
      %s267 = scalar_lea.vmem %s2, %s266
      %p268 = scmp.lt.s32.totalorder %s19, 1
      %s269 = scalar_select %p268, %s19, 1
      %s270 = smul.addr %s269, 8
      %s271 = scalar_lea.vmem %s5, %s270
      %p272 = scmp.lt.s32.totalorder %s19, 1
      %s273 = scalar_select %p272, %s19, 1
      %s274 = smul.addr %s273, 8
      %s275 = scalar_lea.vmem %s6, %s274
      %v277 = vld [vmem:[%s3] sm:$0xf]
      %v278 = vld [vmem:[%s3 + $0x4] sm:$0xf]
      %v279 = vld [vmem:[%s3 + $0x8] sm:$0xf]
      %v280 = vld [vmem:[%s3 + $0xc] sm:$0xf]
      %v281 = vld [vmem:[%s4] sm:$0x1]
      %s282 = sld [smem:[#allocation2]]
      %v283 = vld [vmem:[%s263] sm:$0xff]
      %v284 = vpack.c.bf16 %v283, %v283
      %v286 = vlaneseq
      %v287 = vshrl.u32 %v286, 7
      %v288 = vsub.s32 0, %v287
      %v289 = vrot.slane %v281, %v288
      %v295 = vunpack.c.l.b16 %v277
      %v296 = vunpack.c.l.b16 %v278
      %v297 = vunpack.c.l.b16 %v279
      %v298 = vunpack.c.l.b16 %v280
      %v299 = vpack.c.b16 %v296, %v295
      %v300 = vpack.c.b16 %v298, %v297
      %vm303 = vcmask 261120
      %v305 = vsel %vm303, %v284, 0
      %307 = vmatprep.subr.bf16.mxu0 0
      %308 = vmatpush1.bf16.msra.mxu0 %v299
      %309 = vmatprep.subr.bf16.mxu0 0
      %310 = vmatpush1.bf16.msra.mxu0 %v300
      %311 = vmatprep.subr.bf16.mxu0 0
      %312 = vmatpush1.bf16.msra.mxu0 0
      %313 = vmatprep.subr.bf16.mxu0 0
      %314 = vmatpush1.bf16.msra.mxu0 0
      %315 = vmatprep.subr.bf16.mxu0 0
      %316 = vmatpush1.bf16.msra.mxu0 0
      %317 = vmatprep.subr.bf16.mxu0 0
      %318 = vmatpush1.bf16.msra.mxu0 0
      %319 = vmatprep.subr.bf16.mxu0 0
      %320 = vmatpush1.bf16.msra.mxu0 0
      %321 = vmatprep.subr.bf16.mxu0 0
      %322 = vmatpush1.bf16.msra.mxu0 0
      %323 = vmatprep.subr.bf16.mxu0 0
      %324 = vmatpush1.bf16.msra.mxu0 0
      %325 = vmatprep.subr.bf16.mxu0 0
      %326 = vmatpush1.bf16.msra.mxu0 0
      %327 = vmatprep.subr.bf16.mxu0 0
      %328 = vmatpush1.bf16.msra.mxu0 0
      %329 = vmatprep.subr.bf16.mxu0 0
      %330 = vmatpush1.bf16.msra.mxu0 0
      %331 = vmatprep.subr.bf16.mxu0 0
      %332 = vmatpush1.bf16.msra.mxu0 0
      %333 = vmatprep.subr.bf16.mxu0 0
      %334 = vmatpush1.bf16.msra.mxu0 0
      %335 = vmatprep.subr.bf16.mxu0 0
      %336 = vmatpush1.bf16.msra.mxu0 0
      %337 = vmatprep.subr.bf16.mxu0 0
      %338 = vmatpush1.bf16.msra.mxu0 0
      %339 = vmatprep.mubr.bf16.mxu0 0
      %340 = vmatmul.mubr.bf16.gmra.mrb[0].mxu0 %v305
      %v341 = vpop.f32.mrb[0].mxu0
      %v342 = vadd.f32 %v289, %v341
      %v343 = vpop.f32.mrb[0].mxu0
      %v344 = vpop.f32.mrb[0].mxu0
      %v345 = vpop.f32.mrb[0].mxu0
      %346 = vdwg.mxu0
      %v347 = vmax.f32 %v342, 0.0
      %vm348 = vcmask 130048
      %v349 = vsel %vm348, %v347, 0.0
      %350 = vadd.xlane.f32.xlu0 %v349
      %v351 = vpop.xlane.xlu0 %350
      %v352 = vstv %s282
      %v353 = vadd.f32 %v351, %v352
      %vm354 = vcmask 7168
      %355 = vst.msk [vmem:[%s271] sm:$0xff] %vm354, %v353
      %v356 = vld [vmem:[%s267] sm:$0xff]
      %v357 = vpack.c.bf16 %v356, %v356
      %v359 = vsel %vm303, %v357, 0
      %361 = vmatprep.subr.bf16.mxu0 0
      %362 = vmatpush1.bf16.msra.mxu0 %v299
      %363 = vmatprep.subr.bf16.mxu0 0
      %364 = vmatpush1.bf16.msra.mxu0 %v300
      %365 = vmatprep.subr.bf16.mxu0 0
      %366 = vmatpush1.bf16.msra.mxu0 0
      %367 = vmatprep.subr.bf16.mxu0 0
      %368 = vmatpush1.bf16.msra.mxu0 0
      %369 = vmatprep.subr.bf16.mxu0 0
      %370 = vmatpush1.bf16.msra.mxu0 0
      %371 = vmatprep.subr.bf16.mxu0 0
      %372 = vmatpush1.bf16.msra.mxu0 0
      %373 = vmatprep.subr.bf16.mxu0 0
      %374 = vmatpush1.bf16.msra.mxu0 0
      %375 = vmatprep.subr.bf16.mxu0 0
      %376 = vmatpush1.bf16.msra.mxu0 0
      %377 = vmatprep.subr.bf16.mxu0 0
      %378 = vmatpush1.bf16.msra.mxu0 0
      %379 = vmatprep.subr.bf16.mxu0 0
      %380 = vmatpush1.bf16.msra.mxu0 0
      %381 = vmatprep.subr.bf16.mxu0 0
      %382 = vmatpush1.bf16.msra.mxu0 0
      %383 = vmatprep.subr.bf16.mxu0 0
      %384 = vmatpush1.bf16.msra.mxu0 0
      %385 = vmatprep.subr.bf16.mxu0 0
      %386 = vmatpush1.bf16.msra.mxu0 0
      %387 = vmatprep.subr.bf16.mxu0 0
      %388 = vmatpush1.bf16.msra.mxu0 0
      %389 = vmatprep.subr.bf16.mxu0 0
      %390 = vmatpush1.bf16.msra.mxu0 0
      %391 = vmatprep.subr.bf16.mxu0 0
      %392 = vmatpush1.bf16.msra.mxu0 0
      %393 = vmatprep.mubr.bf16.mxu0 0
      %394 = vmatmul.mubr.bf16.gmra.mrb[0].mxu0 %v359
      %v395 = vpop.f32.mrb[0].mxu0
      %v396 = vadd.f32 %v289, %v395
      %v397 = vpop.f32.mrb[0].mxu0
      %v398 = vpop.f32.mrb[0].mxu0
      %v399 = vpop.f32.mrb[0].mxu0
      %400 = vdwg.mxu0
      %v401 = vmax.f32 %v396, 0.0
      %v402 = vsel %vm348, %v401, 0.0
      %403 = vadd.xlane.f32.xlu0 %v402
      %v404 = vpop.xlane.xlu0 %403
      %v405 = vadd.f32 %v404, %v352
      %406 = vst.msk [vmem:[%s275] sm:$0xff] %vm354, %v405
      %p407 = scmp.lt.s32.totalorder %s19, 1
      %s408 = scalar_select %p407, %s19, 1
      %s409 = smul.addr %s408, 8
      %s410 = scalar_lea.vmem %s5, %s409
      %p411 = scmp.lt.s32.totalorder %s19, 1
      %s412 = scalar_select %p411, %s19, 1
      %s413 = smul.addr %s412, 8
      %s414 = scalar_lea.vmem %s6, %s413
      // Predicated region
      $region41: #{ggd_forward.1} parent=39 // pred_check
        %p415 = pneg %p152
      $region42: #{ggd_forward.1} parent=39 // pred_check_branch
        %417 = sbr.rel (%p415) target = $region44
      $region43: #{ggd_forward.1} parent=39 // pred_region
        _
      $region44: #{ggd_forward.1} parent=39 // pred_fallthru
        _
      // Predicated region
      $region45: #{ggd_forward.1} parent=39 // pred_check
        %p418 = pneg %p178
      $region46: #{ggd_forward.1} parent=39 // pred_check_branch
        %420 = sbr.rel (%p418) target = $region48
      $region47: #{ggd_forward.1} parent=39 // pred_region
        _
      $region48: #{ggd_forward.1} parent=39 // pred_fallthru
        _
    $region40: #{ggd_forward.1} parent=5 // pred_fallthru
      _
    %p421 = scmp.le.s32.totalorder 2, %s14
    // Predicated region
    $region49: #{ggd_forward.1} parent=5 // pred_check
      %p422 = pneg %p421
    $region50: #{ggd_forward.1} parent=5 // pred_check_branch
      %424 = sbr.rel (%p422) target = $region52
    $region51: #{ggd_forward.1} parent=5 // pred_region
      %s425 = ssub.s32 %s14, 2
      // Predicated region
      $region53: #{ggd_forward.1} parent=51 // pred_check
        %p426 = pneg %p158
      $region54: #{ggd_forward.1} parent=51 // pred_check_branch
        %428 = sbr.rel (%p426) target = $region56
      $region55: #{ggd_forward.1} parent=51 // pred_region
        %p429 = scmp.lt.s32.totalorder %s20, 1
        %s430 = scalar_select %p429, %s20, 1
        %s431 = smul.addr %s430, 8
        %s432 = scalar_lea.vmem %s5, %s431
      $region56: #{ggd_forward.1} parent=51 // pred_fallthru
        _
      // Predicated region
      $region57: #{ggd_forward.1} parent=51 // pred_check
        %p433 = pneg %p184
      $region58: #{ggd_forward.1} parent=51 // pred_check_branch
        %435 = sbr.rel (%p433) target = $region60
      $region59: #{ggd_forward.1} parent=51 // pred_region
        %p436 = scmp.lt.s32.totalorder %s20, 1
        %s437 = scalar_select %p436, %s20, 1
        %s438 = smul.addr %s437, 8
        %s439 = scalar_lea.vmem %s6, %s438
      $region60: #{ggd_forward.1} parent=51 // pred_fallthru
        _
    $region52: #{ggd_forward.1} parent=5 // pred_fallthru
      _
  $region6: #{ggd_forward.1} parent=0 // loop_footer
    %s18 = sadd.s32 1, %s14
  $region7: #{ggd_forward.1} parent=0 // loop_footer_branch
    %13 = sbr.rel target = $region3
  $region8: #{ggd_forward.1} parent=0 // loop_exit
    _

</llo_original>
